<compile_context>
chip_gen: v6e
topology: v6e:2x2x1
jax: 0.10.0
libtpu: 0.0.40
codegen_flags: <defaults>
</compile_context>

<pallas_src>
import functools

import numpy as np
import jax
import jax.numpy as jnp
from jax import lax
from jax.experimental import pallas as pl
from jax.experimental.pallas import tpu as pltpu


def _round_up(x, m):
    return ((x + m - 1) // m) * m


def _vmem_capacity_bytes():
    try:
        return int(pltpu.get_tpu_info().vmem_capacity_bytes)
    except Exception:
        return 64 * 1024 * 1024  # conservative (v7x-sized) fallback


def _plan(hw, batch, c_in, c_out, max_tile=512):
    """Pick (lane tile, padded HW, vmem limit).

    HW is padded to a multiple of 128 only; the tile is a 128-multiple divisor
    of the padded extent so no lanes are wasted to round-up-to-tile padding.
    """
    hw_pad = _round_up(hw, 128)
    cap = _vmem_capacity_bytes()
    budget = max(8 << 20, int(cap * 0.45))

    rows_x = 2 * c_in
    rows_d = 2 * c_in * c_out
    rows_y = 2 * c_out
    # f32 bytes per HW lane across all double-buffered in/out blocks.
    per_lane = 4 * 2 * (rows_x + rows_d + rows_y + rows_x)
    cap_tile = max(128, ((budget // per_lane) // 128) * 128)
    tile_cap = min(max_tile, cap_tile, hw_pad)

    m = hw_pad // 128
    divs = [d * 128 for d in range(1, m + 1) if m % d == 0]
    fitting = [d for d in divs if d <= tile_cap]
    tile = max(fitting) if fitting else 128

    # v7x has 2 TensorCores per chip: aim for >= 4 parallel grid steps.
    while batch * (hw_pad // tile) < 4 and tile > 128:
        smaller = [d for d in divs if d < tile]
        if not smaller:
            break
        tile = max(smaller)

    vmem_limit = max(32 << 20, min(int(cap * 0.75), 112 << 20))
    return tile, hw_pad, vmem_limit


def _stack_ri(t, hw_pad):
    """(..., C, H, Wh, 2) -> (..., 2*C, hw_pad) f32 with [real rows ; imag rows]."""
    t = jnp.moveaxis(t, -1, -4)                    # (..., 2, C, H, Wh)
    shp = t.shape
    t = t.reshape(shp[:-4] + (shp[-4] * shp[-3], shp[-2] * shp[-1]))
    hw = t.shape[-1]
    if hw_pad > hw:
        pad = [(0, 0)] * (t.ndim - 1) + [(0, hw_pad - hw)]
        t = jnp.pad(t, pad)
    return t.astype(jnp.float32)


def _solve_fft_kernel(alpha_ref, x_ref, d_ref, y_ref, o_ref, *, c_in, c_out):
    n = pl.program_id(0)
    # Scalar path (SMEM), hoisted before any vector work: a = alpha / C_in.
    a = alpha_ref[n] / c_in
    inv_a = 1.0 / a

    x = x_ref[0]                                   # (2*C_in, T): [Xr ; Xi]
    rows, t = x.shape

    # sign_hi = -1 on the real-row half, +1 on the imag-row half.
    row = lax.broadcasted_iota(jnp.int32, (rows, t), 0)
    sign_hi = jnp.where(row < c_in, jnp.float32(-1.0), jnp.float32(1.0))
    # x_sn = [Xi ; -Xr]: lets Im(sum_i conj(D)*X) be a full-sublane reduce.
    x_sn = pltpu.roll(x, shift=c_in, axis=0) * (-sign_hi)

    def body(o, carry):
        acc_a, acc_b = carry
        d = d_ref[0, o]                                      # (2*C_in, T): [Dr ; Di]
        ypr = y_ref[0, pl.ds(o, 1), :] * inv_a               # Re(Y)/a, (1, T)
        ypi = y_ref[0, pl.ds(c_out + o, 1), :] * inv_a       # Im(Y)/a, (1, T)

        s = jnp.sum(d * d, axis=0, keepdims=True)            # sum_i |D_i|^2
        cxr = jnp.sum(d * x, axis=0, keepdims=True)          # Re(sum_i conj(D)X)
        cxi = jnp.sum(d * x_sn, axis=0, keepdims=True)       # Im(sum_i conj(D)X)

        # q = numerator/denominator with both pre-divided by a:
        #   num/a = Y/a * S + sum conj(D)X ; den/a = S + a.  Exact divide
        # (approx reciprocal previously broke the tolerance check).
        inv_den = 1.0 / (s + a)
        qr = (ypr * s + cxr) * inv_den
        qi = (ypi * s + cxi) * inv_den
        wr = ypr - qr                                         # w = Y/a - q
        wi = ypi - qi

        return acc_a + d * wr, acc_b + d * wi

    acc0 = jnp.zeros_like(x)
    acc_a, acc_b = lax.fori_loop(0, c_out, body, (acc0, acc0), unroll=True)

    # sum_o D*w:  real rows = accA_top - accB_bot ; imag rows = accA_bot + accB_top.
    cross = pltpu.roll(acc_b, shift=c_in, axis=0) * sign_hi
    # mean over C_out:  out = X + sum_o D*w / C_out   (== mean(factor1 - factor2))
    o_ref[0] = x + (acc_a + cross) * (1.0 / c_out)


def solve_fft(X, D, Y, alpha, x_size, *, max_tile=512):
    """
    X: (N, 1, C_in, H, Wh, 2)   D: (N, C_out, C_in, H, Wh, 2)
    Y: (N, C_out, 1, H, Wh, 2)  alpha: (N, 1, 1, 1)
    Returns irfft2 of the frequency-domain solve, spatial size x_size.
    """
    N, _, C_in, H, Wh, _ = X.shape
    C_out = D.shape[1]
    HW = H * Wh

    tile, hw_pad, vmem_limit = _plan(HW, N, C_in, C_out, max_tile=max_tile)
    grid_hw = hw_pad // tile

    # TODO(synk): this real/imag-stacking relayout of D is one extra HBM round
    # trip of the dominant tensor; ideally X/D/Y would be produced upstream
    # already in the (.., 2*C, HW_pad) layout (or fused into the pallas_call
    # operand stream via allow_input_fusion).
    Xk = _stack_ri(X[:, 0], hw_pad)          # (N, 2*C_in,        hw_pad)
    Dk = _stack_ri(D, hw_pad)                # (N, C_out, 2*C_in, hw_pad)
    Yk = _stack_ri(Y[:, :, 0], hw_pad)       # (N, 2*C_out,       hw_pad)
    ak = alpha.reshape(N).astype(jnp.float32)

    # TODO(synk): for large C_in*C_out (v7x's 64 MiB VMEM) add a third grid
    # axis over C_out (marked "arbitrary") instead of shrinking the lane tile.
    out = pl.pallas_call(
        functools.partial(_solve_fft_kernel, c_in=C_in, c_out=C_out),
        out_shape=jax.ShapeDtypeStruct((N, 2 * C_in, hw_pad), jnp.float32),
        grid_spec=pltpu.PrefetchScalarGridSpec(
            num_scalar_prefetch=1,                     # alpha -> SMEM scalar path
            grid=(N, grid_hw),
            in_specs=[
                pl.BlockSpec((1, 2 * C_in, tile),
                             lambda n, h, a_sref: (n, 0, h)),
                pl.BlockSpec((1, C_out, 2 * C_in, tile),
                             lambda n, h, a_sref: (n, 0, 0, h)),
                pl.BlockSpec((1, 2 * C_out, tile),
                             lambda n, h, a_sref: (n, 0, h)),
            ],
            out_specs=pl.BlockSpec((1, 2 * C_in, tile),
                                   lambda n, h, a_sref: (n, 0, h)),
        ),
        compiler_params=pltpu.CompilerParams(
            dimension_semantics=("parallel", "parallel"),
            vmem_limit_bytes=vmem_limit,
        ),
    )(ak, Xk, Dk, Yk)

    out = out[:, :, :HW]                              # drop lane padding
    Xc = (out[:, :C_in] + 1j * out[:, C_in:]).reshape(N, C_in, H, Wh)
    # TODO(synk): torch.irfft has no Pallas equivalent; inverse real FFT is
    # done with jnp.fft.irfft2 (onesided=True, normalized=False semantics).
    return jnp.fft.irfft2(Xc, s=tuple(int(s) for s in x_size), axes=(-2, -1))


def _solve_fft_reference(X, D, Y, alpha, x_size):
    """Pure-JAX reference mirroring the PyTorch complex helpers."""
    a = (alpha / X.shape[2])[..., None, None]             # real scalar per batch
    Xc = X[..., 0] + 1j * X[..., 1]                       # (N,1,C_in,H,Wh)
    Dc = D[..., 0] + 1j * D[..., 1]
    Yc = Y[..., 0] + 1j * Y[..., 1]
    ar = a[..., 0]                                        # (N,1,1,1,1)
    Z = Yc * Dc + ar * Xc
    f1 = Z / ar
    num = jnp.sum(jnp.conj(Dc) * Z, axis=2, keepdims=True)
    den = ar * jnp.sum(jnp.conj(Dc) * Dc, axis=2, keepdims=True) + ar ** 2
    f2 = Dc * (num / den)
    Xout = jnp.mean(f1 - f2, axis=1)                      # (N, C_in, H, Wh)
    return jnp.fft.irfft2(Xout, s=tuple(int(s) for s in x_size), axes=(-2, -1))


if __name__ == "__main__":
    # Small, deterministic shapes consistent with the module's forward:
    # spatial 16x16 image -> onesided rfft width 16//2 + 1 = 9.
    N, C_out, C_in, H, Wfull = 2, 4, 4, 16, 16
    Wh = Wfull // 2 + 1
    x_size = np.array([H, Wfull])

    key = jax.random.PRNGKey(0)
    kx, kd, ky, ka = jax.random.split(key, 4)
    X = jax.random.normal(kx, (N, 1, C_in, H, Wh, 2), dtype=jnp.float32)
    D = jax.random.normal(kd, (N, C_out, C_in, H, Wh, 2), dtype=jnp.float32)
    Y = jax.random.normal(ky, (N, C_out, 1, H, Wh, 2), dtype=jnp.float32)
    alpha = 0.1 + jax.random.uniform(ka, (N, 1, 1, 1), dtype=jnp.float32)

    out = solve_fft(X, D, Y, alpha, x_size)
    out = jax.block_until_ready(out)

    ref = jax.block_until_ready(_solve_fft_reference(X, D, Y, alpha, x_size))
    np.testing.assert_allclose(np.asarray(out), np.asarray(ref),
                               rtol=2e-3, atol=2e-3)
    assert out.shape == (N, C_in, H, Wfull)
    print("KERNEL_OK")
</pallas_src>

<mosaic_0001>
module attributes {stable_mosaic.version = 11 : i64} {
  func.func @_solve_fft_kernel(%arg0: i32, %arg1: i32, %arg2: memref<2xf32, #tpu.memory_space<smem>>, %arg3: memref<1x8x128xf32, #tpu.memory_space<vmem>>, %arg4: memref<1x4x8x128xf32, #tpu.memory_space<vmem>>, %arg5: memref<1x8x128xf32, #tpu.memory_space<vmem>>, %arg6: memref<1x8x128xf32, #tpu.memory_space<vmem>>) attributes {dimension_semantics = [#tpu.dimension_semantics<parallel>, #tpu.dimension_semantics<parallel>], iteration_bounds = array<i64: 2, 2>, scalar_prefetch = 1 : i64, scratch_operands = 0 : i64, tpu.core_type = #tpu.core_type<tc>, window_params = [{transform_indices = @transform_0, window_bounds = array<i64: 1, 8, 128>}, {transform_indices = @transform_1, window_bounds = array<i64: 1, 4, 8, 128>}, {transform_indices = @transform_2, window_bounds = array<i64: 1, 8, 128>}, {transform_indices = @transform_3, window_bounds = array<i64: 1, 8, 128>}]} {
    %0 = arith.index_cast %arg0 : i32 to index
    %1 = memref.load %arg2[%0] : memref<2xf32, #tpu.memory_space<smem>>
    %cst = arith.constant 4.000000e+00 : f32
    %2 = arith.divf %1, %cst : f32
    %cst_0 = arith.constant 1.000000e+00 : f32
    %3 = arith.divf %cst_0, %2 : f32
    %c0 = arith.constant 0 : index
    %c0_1 = arith.constant 0 : index
    %c0_2 = arith.constant 0 : index
    %4 = vector.load %arg3[%c0, %c0_1, %c0_2] : memref<1x8x128xf32, #tpu.memory_space<vmem>>, vector<1x8x128xf32>
    %5 = vector.shape_cast %4 : vector<1x8x128xf32> to vector<8x128xf32>
    %6 = tpu.iota {dimensions = array<i32: 0>} : vector<8x128xi32>
    %c4_i32 = arith.constant 4 : i32
    %7 = vector.broadcast %c4_i32 : i32 to vector<8x128xi32>
    %8 = arith.cmpi slt, %6, %7 : vector<8x128xi32>
    %cst_3 = arith.constant -1.000000e+00 : f32
    %cst_4 = arith.constant 1.000000e+00 : f32
    %9 = vector.broadcast %cst_3 : f32 to vector<8x128xf32>
    %10 = vector.broadcast %cst_4 : f32 to vector<8x128xf32>
    %11 = arith.select %8, %9, %10 : vector<8x128xi1>, vector<8x128xf32>
    %c4_i32_5 = arith.constant 4 : i32
    %12 = tpu.dynamic_rotate %5 by %c4_i32_5 dim 0 : vector<8x128xf32>, i32 -> vector<8x128xf32>
    %cst_6 = arith.constant 0.000000e+00 : f32
    %13 = vector.broadcast %cst_6 : f32 to vector<8x128xf32>
    %14 = arith.subf %13, %11 : vector<8x128xf32>
    %15 = arith.mulf %12, %14 : vector<8x128xf32>
    %cst_7 = arith.constant 0.000000e+00 : f32
    %16 = vector.broadcast %cst_7 : f32 to vector<8x128xf32>
    %c0_i32 = arith.constant 0 : i32
    %c0_8 = arith.constant 0 : index
    %17 = arith.index_cast %c0_i32 : i32 to index
    %c0_9 = arith.constant 0 : index
    %c0_10 = arith.constant 0 : index
    %18 = vector.load %arg4[%c0_8, %17, %c0_9, %c0_10] : memref<1x4x8x128xf32, #tpu.memory_space<vmem>>, vector<1x1x8x128xf32>
    %19 = vector.shape_cast %18 : vector<1x1x8x128xf32> to vector<8x128xf32>
    %c0_11 = arith.constant 0 : index
    %20 = arith.index_cast %c0_i32 : i32 to index
    %c0_12 = arith.constant 0 : index
    %21 = vector.load %arg5[%c0_11, %20, %c0_12] : memref<1x8x128xf32, #tpu.memory_space<vmem>>, vector<1x1x128xf32>
    %22 = vector.shape_cast %21 : vector<1x1x128xf32> to vector<1x128xf32>
    %23 = vector.broadcast %3 : f32 to vector<1x128xf32>
    %24 = arith.mulf %22, %23 : vector<1x128xf32>
    %c4_i32_13 = arith.constant 4 : i32
    %25 = arith.addi %c4_i32_13, %c0_i32 : i32
    %c0_14 = arith.constant 0 : index
    %26 = arith.index_cast %25 : i32 to index
    %c0_15 = arith.constant 0 : index
    %27 = vector.load %arg5[%c0_14, %26, %c0_15] : memref<1x8x128xf32, #tpu.memory_space<vmem>>, vector<1x1x128xf32>
    %28 = vector.shape_cast %27 : vector<1x1x128xf32> to vector<1x128xf32>
    %29 = vector.broadcast %3 : f32 to vector<1x128xf32>
    %30 = arith.mulf %28, %29 : vector<1x128xf32>
    %31 = arith.mulf %19, %19 : vector<8x128xf32>
    %cst_16 = arith.constant dense<0.000000e+00> : vector<128xf32>
    %32 = vector.multi_reduction <add>, %31, %cst_16 [0] : vector<8x128xf32> to vector<128xf32>
    %33 = vector.shape_cast %32 : vector<128xf32> to vector<1x128xf32>
    %34 = arith.mulf %19, %5 : vector<8x128xf32>
    %cst_17 = arith.constant dense<0.000000e+00> : vector<128xf32>
    %35 = vector.multi_reduction <add>, %34, %cst_17 [0] : vector<8x128xf32> to vector<128xf32>
    %36 = vector.shape_cast %35 : vector<128xf32> to vector<1x128xf32>
    %37 = arith.mulf %19, %15 : vector<8x128xf32>
    %cst_18 = arith.constant dense<0.000000e+00> : vector<128xf32>
    %38 = vector.multi_reduction <add>, %37, %cst_18 [0] : vector<8x128xf32> to vector<128xf32>
    %39 = vector.shape_cast %38 : vector<128xf32> to vector<1x128xf32>
    %40 = vector.broadcast %2 : f32 to vector<1x128xf32>
    %41 = arith.addf %33, %40 : vector<1x128xf32>
    %cst_19 = arith.constant 1.000000e+00 : f32
    %42 = vector.broadcast %cst_19 : f32 to vector<1x128xf32>
    %43 = arith.divf %42, %41 : vector<1x128xf32>
    %44 = arith.mulf %24, %33 : vector<1x128xf32>
    %45 = arith.addf %44, %36 : vector<1x128xf32>
    %46 = arith.mulf %45, %43 : vector<1x128xf32>
    %47 = arith.mulf %30, %33 : vector<1x128xf32>
    %48 = arith.addf %47, %39 : vector<1x128xf32>
    %49 = arith.mulf %48, %43 : vector<1x128xf32>
    %50 = arith.subf %24, %46 : vector<1x128xf32>
    %51 = arith.subf %30, %49 : vector<1x128xf32>
    %52 = vector.broadcast %50 : vector<1x128xf32> to vector<8x128xf32>
    %53 = arith.mulf %19, %52 : vector<8x128xf32>
    %54 = arith.addf %16, %53 : vector<8x128xf32>
    %55 = vector.broadcast %51 : vector<1x128xf32> to vector<8x128xf32>
    %56 = arith.mulf %19, %55 : vector<8x128xf32>
    %57 = arith.addf %16, %56 : vector<8x128xf32>
    %c1_i32 = arith.constant 1 : i32
    %c0_20 = arith.constant 0 : index
    %58 = arith.index_cast %c1_i32 : i32 to index
    %c0_21 = arith.constant 0 : index
    %c0_22 = arith.constant 0 : index
    %59 = vector.load %arg4[%c0_20, %58, %c0_21, %c0_22] : memref<1x4x8x128xf32, #tpu.memory_space<vmem>>, vector<1x1x8x128xf32>
    %60 = vector.shape_cast %59 : vector<1x1x8x128xf32> to vector<8x128xf32>
    %c0_23 = arith.constant 0 : index
    %61 = arith.index_cast %c1_i32 : i32 to index
    %c0_24 = arith.constant 0 : index
    %62 = vector.load %arg5[%c0_23, %61, %c0_24] : memref<1x8x128xf32, #tpu.memory_space<vmem>>, vector<1x1x128xf32>
    %63 = vector.shape_cast %62 : vector<1x1x128xf32> to vector<1x128xf32>
    %64 = vector.broadcast %3 : f32 to vector<1x128xf32>
    %65 = arith.mulf %63, %64 : vector<1x128xf32>
    %c4_i32_25 = arith.constant 4 : i32
    %66 = arith.addi %c4_i32_25, %c1_i32 : i32
    %c0_26 = arith.constant 0 : index
    %67 = arith.index_cast %66 : i32 to index
    %c0_27 = arith.constant 0 : index
    %68 = vector.load %arg5[%c0_26, %67, %c0_27] : memref<1x8x128xf32, #tpu.memory_space<vmem>>, vector<1x1x128xf32>
    %69 = vector.shape_cast %68 : vector<1x1x128xf32> to vector<1x128xf32>
    %70 = vector.broadcast %3 : f32 to vector<1x128xf32>
    %71 = arith.mulf %69, %70 : vector<1x128xf32>
    %72 = arith.mulf %60, %60 : vector<8x128xf32>
    %cst_28 = arith.constant dense<0.000000e+00> : vector<128xf32>
    %73 = vector.multi_reduction <add>, %72, %cst_28 [0] : vector<8x128xf32> to vector<128xf32>
    %74 = vector.shape_cast %73 : vector<128xf32> to vector<1x128xf32>
    %75 = arith.mulf %60, %5 : vector<8x128xf32>
    %cst_29 = arith.constant dense<0.000000e+00> : vector<128xf32>
    %76 = vector.multi_reduction <add>, %75, %cst_29 [0] : vector<8x128xf32> to vector<128xf32>
    %77 = vector.shape_cast %76 : vector<128xf32> to vector<1x128xf32>
    %78 = arith.mulf %60, %15 : vector<8x128xf32>
    %cst_30 = arith.constant dense<0.000000e+00> : vector<128xf32>
    %79 = vector.multi_reduction <add>, %78, %cst_30 [0] : vector<8x128xf32> to vector<128xf32>
    %80 = vector.shape_cast %79 : vector<128xf32> to vector<1x128xf32>
    %81 = vector.broadcast %2 : f32 to vector<1x128xf32>
    %82 = arith.addf %74, %81 : vector<1x128xf32>
    %cst_31 = arith.constant 1.000000e+00 : f32
    %83 = vector.broadcast %cst_31 : f32 to vector<1x128xf32>
    %84 = arith.divf %83, %82 : vector<1x128xf32>
    %85 = arith.mulf %65, %74 : vector<1x128xf32>
    %86 = arith.addf %85, %77 : vector<1x128xf32>
    %87 = arith.mulf %86, %84 : vector<1x128xf32>
    %88 = arith.mulf %71, %74 : vector<1x128xf32>
    %89 = arith.addf %88, %80 : vector<1x128xf32>
    %90 = arith.mulf %89, %84 : vector<1x128xf32>
    %91 = arith.subf %65, %87 : vector<1x128xf32>
    %92 = arith.subf %71, %90 : vector<1x128xf32>
    %93 = vector.broadcast %91 : vector<1x128xf32> to vector<8x128xf32>
    %94 = arith.mulf %60, %93 : vector<8x128xf32>
    %95 = arith.addf %54, %94 : vector<8x128xf32>
    %96 = vector.broadcast %92 : vector<1x128xf32> to vector<8x128xf32>
    %97 = arith.mulf %60, %96 : vector<8x128xf32>
    %98 = arith.addf %57, %97 : vector<8x128xf32>
    %c2_i32 = arith.constant 2 : i32
    %c0_32 = arith.constant 0 : index
    %99 = arith.index_cast %c2_i32 : i32 to index
    %c0_33 = arith.constant 0 : index
    %c0_34 = arith.constant 0 : index
    %100 = vector.load %arg4[%c0_32, %99, %c0_33, %c0_34] : memref<1x4x8x128xf32, #tpu.memory_space<vmem>>, vector<1x1x8x128xf32>
    %101 = vector.shape_cast %100 : vector<1x1x8x128xf32> to vector<8x128xf32>
    %c0_35 = arith.constant 0 : index
    %102 = arith.index_cast %c2_i32 : i32 to index
    %c0_36 = arith.constant 0 : index
    %103 = vector.load %arg5[%c0_35, %102, %c0_36] : memref<1x8x128xf32, #tpu.memory_space<vmem>>, vector<1x1x128xf32>
    %104 = vector.shape_cast %103 : vector<1x1x128xf32> to vector<1x128xf32>
    %105 = vector.broadcast %3 : f32 to vector<1x128xf32>
    %106 = arith.mulf %104, %105 : vector<1x128xf32>
    %c4_i32_37 = arith.constant 4 : i32
    %107 = arith.addi %c4_i32_37, %c2_i32 : i32
    %c0_38 = arith.constant 0 : index
    %108 = arith.index_cast %107 : i32 to index
    %c0_39 = arith.constant 0 : index
    %109 = vector.load %arg5[%c0_38, %108, %c0_39] : memref<1x8x128xf32, #tpu.memory_space<vmem>>, vector<1x1x128xf32>
    %110 = vector.shape_cast %109 : vector<1x1x128xf32> to vector<1x128xf32>
    %111 = vector.broadcast %3 : f32 to vector<1x128xf32>
    %112 = arith.mulf %110, %111 : vector<1x128xf32>
    %113 = arith.mulf %101, %101 : vector<8x128xf32>
    %cst_40 = arith.constant dense<0.000000e+00> : vector<128xf32>
    %114 = vector.multi_reduction <add>, %113, %cst_40 [0] : vector<8x128xf32> to vector<128xf32>
    %115 = vector.shape_cast %114 : vector<128xf32> to vector<1x128xf32>
    %116 = arith.mulf %101, %5 : vector<8x128xf32>
    %cst_41 = arith.constant dense<0.000000e+00> : vector<128xf32>
    %117 = vector.multi_reduction <add>, %116, %cst_41 [0] : vector<8x128xf32> to vector<128xf32>
    %118 = vector.shape_cast %117 : vector<128xf32> to vector<1x128xf32>
    %119 = arith.mulf %101, %15 : vector<8x128xf32>
    %cst_42 = arith.constant dense<0.000000e+00> : vector<128xf32>
    %120 = vector.multi_reduction <add>, %119, %cst_42 [0] : vector<8x128xf32> to vector<128xf32>
    %121 = vector.shape_cast %120 : vector<128xf32> to vector<1x128xf32>
    %122 = vector.broadcast %2 : f32 to vector<1x128xf32>
    %123 = arith.addf %115, %122 : vector<1x128xf32>
    %cst_43 = arith.constant 1.000000e+00 : f32
    %124 = vector.broadcast %cst_43 : f32 to vector<1x128xf32>
    %125 = arith.divf %124, %123 : vector<1x128xf32>
    %126 = arith.mulf %106, %115 : vector<1x128xf32>
    %127 = arith.addf %126, %118 : vector<1x128xf32>
    %128 = arith.mulf %127, %125 : vector<1x128xf32>
    %129 = arith.mulf %112, %115 : vector<1x128xf32>
    %130 = arith.addf %129, %121 : vector<1x128xf32>
    %131 = arith.mulf %130, %125 : vector<1x128xf32>
    %132 = arith.subf %106, %128 : vector<1x128xf32>
    %133 = arith.subf %112, %131 : vector<1x128xf32>
    %134 = vector.broadcast %132 : vector<1x128xf32> to vector<8x128xf32>
    %135 = arith.mulf %101, %134 : vector<8x128xf32>
    %136 = arith.addf %95, %135 : vector<8x128xf32>
    %137 = vector.broadcast %133 : vector<1x128xf32> to vector<8x128xf32>
    %138 = arith.mulf %101, %137 : vector<8x128xf32>
    %139 = arith.addf %98, %138 : vector<8x128xf32>
    %c3_i32 = arith.constant 3 : i32
    %c0_44 = arith.constant 0 : index
    %140 = arith.index_cast %c3_i32 : i32 to index
    %c0_45 = arith.constant 0 : index
    %c0_46 = arith.constant 0 : index
    %141 = vector.load %arg4[%c0_44, %140, %c0_45, %c0_46] : memref<1x4x8x128xf32, #tpu.memory_space<vmem>>, vector<1x1x8x128xf32>
    %142 = vector.shape_cast %141 : vector<1x1x8x128xf32> to vector<8x128xf32>
    %c0_47 = arith.constant 0 : index
    %143 = arith.index_cast %c3_i32 : i32 to index
    %c0_48 = arith.constant 0 : index
    %144 = vector.load %arg5[%c0_47, %143, %c0_48] : memref<1x8x128xf32, #tpu.memory_space<vmem>>, vector<1x1x128xf32>
    %145 = vector.shape_cast %144 : vector<1x1x128xf32> to vector<1x128xf32>
    %146 = vector.broadcast %3 : f32 to vector<1x128xf32>
    %147 = arith.mulf %145, %146 : vector<1x128xf32>
    %c4_i32_49 = arith.constant 4 : i32
    %148 = arith.addi %c4_i32_49, %c3_i32 : i32
    %c0_50 = arith.constant 0 : index
    %149 = arith.index_cast %148 : i32 to index
    %c0_51 = arith.constant 0 : index
    %150 = vector.load %arg5[%c0_50, %149, %c0_51] : memref<1x8x128xf32, #tpu.memory_space<vmem>>, vector<1x1x128xf32>
    %151 = vector.shape_cast %150 : vector<1x1x128xf32> to vector<1x128xf32>
    %152 = vector.broadcast %3 : f32 to vector<1x128xf32>
    %153 = arith.mulf %151, %152 : vector<1x128xf32>
    %154 = arith.mulf %142, %142 : vector<8x128xf32>
    %cst_52 = arith.constant dense<0.000000e+00> : vector<128xf32>
    %155 = vector.multi_reduction <add>, %154, %cst_52 [0] : vector<8x128xf32> to vector<128xf32>
    %156 = vector.shape_cast %155 : vector<128xf32> to vector<1x128xf32>
    %157 = arith.mulf %142, %5 : vector<8x128xf32>
    %cst_53 = arith.constant dense<0.000000e+00> : vector<128xf32>
    %158 = vector.multi_reduction <add>, %157, %cst_53 [0] : vector<8x128xf32> to vector<128xf32>
    %159 = vector.shape_cast %158 : vector<128xf32> to vector<1x128xf32>
    %160 = arith.mulf %142, %15 : vector<8x128xf32>
    %cst_54 = arith.constant dense<0.000000e+00> : vector<128xf32>
    %161 = vector.multi_reduction <add>, %160, %cst_54 [0] : vector<8x128xf32> to vector<128xf32>
    %162 = vector.shape_cast %161 : vector<128xf32> to vector<1x128xf32>
    %163 = vector.broadcast %2 : f32 to vector<1x128xf32>
    %164 = arith.addf %156, %163 : vector<1x128xf32>
    %cst_55 = arith.constant 1.000000e+00 : f32
    %165 = vector.broadcast %cst_55 : f32 to vector<1x128xf32>
    %166 = arith.divf %165, %164 : vector<1x128xf32>
    %167 = arith.mulf %147, %156 : vector<1x128xf32>
    %168 = arith.addf %167, %159 : vector<1x128xf32>
    %169 = arith.mulf %168, %166 : vector<1x128xf32>
    %170 = arith.mulf %153, %156 : vector<1x128xf32>
    %171 = arith.addf %170, %162 : vector<1x128xf32>
    %172 = arith.mulf %171, %166 : vector<1x128xf32>
    %173 = arith.subf %147, %169 : vector<1x128xf32>
    %174 = arith.subf %153, %172 : vector<1x128xf32>
    %175 = vector.broadcast %173 : vector<1x128xf32> to vector<8x128xf32>
    %176 = arith.mulf %142, %175 : vector<8x128xf32>
    %177 = arith.addf %136, %176 : vector<8x128xf32>
    %178 = vector.broadcast %174 : vector<1x128xf32> to vector<8x128xf32>
    %179 = arith.mulf %142, %178 : vector<8x128xf32>
    %180 = arith.addf %139, %179 : vector<8x128xf32>
    %c4_i32_56 = arith.constant 4 : i32
    %c4_i32_57 = arith.constant 4 : i32
    %181 = tpu.dynamic_rotate %180 by %c4_i32_57 dim 0 : vector<8x128xf32>, i32 -> vector<8x128xf32>
    %182 = arith.mulf %181, %11 : vector<8x128xf32>
    %183 = arith.addf %177, %182 : vector<8x128xf32>
    %cst_58 = arith.constant 2.500000e-01 : f32
    %184 = vector.broadcast %cst_58 : f32 to vector<8x128xf32>
    %185 = arith.mulf %183, %184 : vector<8x128xf32>
    %186 = arith.addf %5, %185 : vector<8x128xf32>
    %c0_59 = arith.constant 0 : index
    %c0_60 = arith.constant 0 : index
    %c0_61 = arith.constant 0 : index
    %187 = vector.load %arg6[%c0_59, %c0_60, %c0_61] : memref<1x8x128xf32, #tpu.memory_space<vmem>>, vector<1x8x128xf32>
    %188 = vector.shape_cast %187 : vector<1x8x128xf32> to vector<8x128xf32>
    %189 = vector.shape_cast %186 : vector<8x128xf32> to vector<1x8x128xf32>
    tpu.vector_store %arg6[%c0_59, %c0_60, %c0_61], %189 {strides = array<i32>} : memref<1x8x128xf32, #tpu.memory_space<vmem>>, vector<1x8x128xf32>,
    return
  }
  func.func @transform_0(%arg0: i32, %arg1: i32, %arg2: memref<2xf32, #tpu.memory_space<smem>>) -> (i32, i32, i32) {
    %c0_i32 = arith.constant 0 : i32
    %c0_i32_0 = arith.constant 0 : i32
    return %arg0, %c0_i32, %arg1 : i32, i32, i32
  }
  func.func @transform_1(%arg0: i32, %arg1: i32, %arg2: memref<2xf32, #tpu.memory_space<smem>>) -> (i32, i32, i32, i32) {
    %c0_i32 = arith.constant 0 : i32
    %c0_i32_0 = arith.constant 0 : i32
    %c0_i32_1 = arith.constant 0 : i32
    return %arg0, %c0_i32, %c0_i32_0, %arg1 : i32, i32, i32, i32
  }
  func.func @transform_2(%arg0: i32, %arg1: i32, %arg2: memref<2xf32, #tpu.memory_space<smem>>) -> (i32, i32, i32) {
    %c0_i32 = arith.constant 0 : i32
    %c0_i32_0 = arith.constant 0 : i32
    return %arg0, %c0_i32, %arg1 : i32, i32, i32
  }
  func.func @transform_3(%arg0: i32, %arg1: i32, %arg2: memref<2xf32, #tpu.memory_space<smem>>) -> (i32, i32, i32) {
    %c0_i32 = arith.constant 0 : i32
    %c0_i32_0 = arith.constant 0 : i32
    return %arg0, %c0_i32, %arg1 : i32, i32, i32
  }
}

</mosaic_0001>

<llo_original>
// kernel: tpu_custom_call.1
$region0: #{tpu_custom_call.1}
  #allocation0 [shape = 'u32[]', space=smem, size = 0x4, offset = 0x4, fixed_abs, tag = 'smem constant byte address 0x4 - core index']
  #allocation1 [shape = 'u32[144,128]{1,0:T(1,128)}', space=vmem, size = 0x12000, scoped, tag = 'internal scratch']
  #allocation2 [shape = 's32[1]{0}', space=sflag, size = 0x4, scoped, tag = 'scoped memory for tpu_custom_call.1']
  #allocation3 [shape = 'u8[512]{0}', space=smem, size = 0x200, scoped, tag = 'prefetched SMEM operand 0']
  %s0 = inlined_call_operand.hbm [shape: f32[2], index: 0, kind: input, shape index: {}]
  %s1 = inlined_call_operand.hbm [shape: f32[2,8,256], index: 1, kind: input, shape index: {}]
  %s2 = inlined_call_operand.hbm [shape: f32[2,4,8,256], index: 2, kind: input, shape index: {}]
  %s3 = inlined_call_operand.hbm [shape: f32[2,8,256], index: 3, kind: input, shape index: {}]
  %s4 = inlined_call_operand.hbm [shape: f32[2,8,256], index: 4, kind: output, shape index: {}]
  %s5 = sld [smem:[#allocation0]]
  $region57: #{tpu_custom_call.1} parent=0
    _
  %s7 = ssub.s32 1, %s5
  %s8 = scalar_select 0, %s7, %s5
  %10 = dma.hbm_to_smem %s0, 16, [#allocation3], [#allocation2]
  %11 = dma.done [#allocation2], 16
  %12 = sfence
  $region1: #{tpu_custom_call.1} parent=0
    #allocation4 [shape = 'u8[8192]{0}', space=vmem, size = 0x2000, scoped, tag = 'input window, operand 1']
    #allocation5 [shape = 's32[2]{0}', space=sflag, size = 0x8, scoped, tag = 'scoped memory for tpu_custom_call.1']
    #allocation6 [shape = 's32[2]{0}', space=sflag, size = 0x8, scoped, tag = 'scoped memory for tpu_custom_call.1']
    #allocation7 [shape = 'u8[32768]{0}', space=vmem, size = 0x8000, scoped, tag = 'input window, operand 2']
    #allocation8 [shape = 's32[2]{0}', space=sflag, size = 0x8, scoped, tag = 'scoped memory for tpu_custom_call.1']
    #allocation9 [shape = 'u8[8192]{0}', space=vmem, size = 0x2000, scoped, tag = 'input window, operand 3']
    #allocation10 [shape = 'u8[8192]{0}', space=vmem, size = 0x2000, scoped, tag = 'output window, operand 0']
    %13 = vsyncpa [#allocation5], 0
    %s14 = scalar_lea.sflag [#allocation5], 1
    %15 = vsyncpa %s14, 0
    %16 = vsyncpa [#allocation8], 0
    %s17 = scalar_lea.sflag [#allocation8], 1
    %18 = vsyncpa %s17, 0
    %19 = vsyncpa [#allocation6], 0
    %s20 = scalar_lea.sflag [#allocation6], 1
    %21 = vsyncpa %s20, 0
    loop: start=0, step=1, limit=6
    $region2: #{tpu_custom_call.1} parent=1 // loop_pre_header
      _
    $region3: #{tpu_custom_call.1} parent=1 // loop_header
      %s23 = sphi 0, %s27
      %p24 = scmp.ge.s32.totalorder %s23, 6
      %s30 = sphi 0, %s42
      %s31 = sphi 0, %s38
      %s32 = sphi 0, %s30
      %s33 = sphi 0, %s31
      %s34 = sphi 0, %s32
      %s35 = sphi 0, %s33
      %s47 = sphi 0, %s49
      %s50 = sphi 0, %s47
      %s51 = sphi 0, %s50
      %s67 = sphi 0, %s51
      %s75 = sphi 0, %s77
      %s78 = sphi 0, %s75
      %s79 = sphi 0, %s78
      %s95 = sphi 0, %s79
      %s103 = sphi 0, %s105
      %s106 = sphi 0, %s103
      %s107 = sphi 0, %s106
      %s123 = sphi 0, %s107
      %s131 = sphi 0, %s133
      %s134 = sphi 0, %s131
      %s135 = sphi 0, %s134
      %s151 = sphi 0, %s135
    $region4: #{tpu_custom_call.1} parent=1 // loop_header_branch
      %26 = sbr.rel (%p24) target = $region8
    $region5: #{tpu_custom_call.1} parent=1 // loop_body
      %s28 = ssub.s32 %s23, 1
      %s29 = ssub.s32 %s23, 2
      %s36 = sadd.s32 1, %s31
      %p37 = scmp.ge.s32.totalorder %s36, 2
      %s38 = scalar_select %p37, 0, %s36
      %s39 = sadd.s32 1, %s30
      %s40 = scalar_select %p37, %s39, %s30
      %p41 = scmp.ge.s32.totalorder %s40, 2
      %s42 = scalar_select %p41, 0, %s40
      %s43 = ssub.s32 %s30, %s42
      %s44 = ssub.s32 %s31, %s38
      %s45 = sor.u32 %s43, %s44
      %p46 = scmp.eq.s32.totalorder %s45, 0
      %s48 = sadd.s32 %s47, 1
      %s49 = scalar_select %p46, %s47, %s48
      %p52 = pneg %p46
      %p53 = scmp.eq.s32.totalorder %s23, 3
      %p54 = por %p52, %p53
      %p55 = scmp.ne.s32.totalorder %s47, %s50
      %p56 = scmp.eq.s32.totalorder %s23, 0
      %p57 = por %p55, %p56
      %p58 = scmp.ne.s32.totalorder %s47, %s50
      %p59 = scmp.eq.s32.totalorder %s28, 3
      %p60 = por %p58, %p59
      %p61 = scmp.ne.s32.totalorder %s50, %s51
      %p62 = scmp.eq.s32.totalorder %s28, 0
      %p63 = por %p61, %p62
      %p64 = scmp.ne.s32.totalorder %s50, %s51
      %p65 = scmp.eq.s32.totalorder %s29, 3
      %p66 = por %p64, %p65
      %p68 = scmp.ne.s32.totalorder %s51, %s67
      %p69 = scmp.eq.s32.totalorder %s29, 0
      %p70 = por %p68, %p69
      %s71 = ssub.s32 %s30, %s42
      %s72 = ssub.s32 %s31, %s38
      %s73 = sor.u32 %s71, %s72
      %p74 = scmp.eq.s32.totalorder %s73, 0
      %s76 = sadd.s32 %s75, 1
      %s77 = scalar_select %p74, %s75, %s76
      %p80 = pneg %p74
      %p81 = scmp.eq.s32.totalorder %s23, 3
      %p82 = por %p80, %p81
      %p83 = scmp.ne.s32.totalorder %s75, %s78
      %p84 = scmp.eq.s32.totalorder %s23, 0
      %p85 = por %p83, %p84
      %p86 = scmp.ne.s32.totalorder %s75, %s78
      %p87 = scmp.eq.s32.totalorder %s28, 3
      %p88 = por %p86, %p87
      %p89 = scmp.ne.s32.totalorder %s78, %s79
      %p90 = scmp.eq.s32.totalorder %s28, 0
      %p91 = por %p89, %p90
      %p92 = scmp.ne.s32.totalorder %s78, %s79
      %p93 = scmp.eq.s32.totalorder %s29, 3
      %p94 = por %p92, %p93
      %p96 = scmp.ne.s32.totalorder %s79, %s95
      %p97 = scmp.eq.s32.totalorder %s29, 0
      %p98 = por %p96, %p97
      %s99 = ssub.s32 %s30, %s42
      %s100 = ssub.s32 %s31, %s38
      %s101 = sor.u32 %s99, %s100
      %p102 = scmp.eq.s32.totalorder %s101, 0
      %s104 = sadd.s32 %s103, 1
      %s105 = scalar_select %p102, %s103, %s104
      %p108 = pneg %p102
      %p109 = scmp.eq.s32.totalorder %s23, 3
      %p110 = por %p108, %p109
      %p111 = scmp.ne.s32.totalorder %s103, %s106
      %p112 = scmp.eq.s32.totalorder %s23, 0
      %p113 = por %p111, %p112
      %p114 = scmp.ne.s32.totalorder %s103, %s106
      %p115 = scmp.eq.s32.totalorder %s28, 3
      %p116 = por %p114, %p115
      %p117 = scmp.ne.s32.totalorder %s106, %s107
      %p118 = scmp.eq.s32.totalorder %s28, 0
      %p119 = por %p117, %p118
      %p120 = scmp.ne.s32.totalorder %s106, %s107
      %p121 = scmp.eq.s32.totalorder %s29, 3
      %p122 = por %p120, %p121
      %p124 = scmp.ne.s32.totalorder %s107, %s123
      %p125 = scmp.eq.s32.totalorder %s29, 0
      %p126 = por %p124, %p125
      %s127 = ssub.s32 %s30, %s42
      %s128 = ssub.s32 %s31, %s38
      %s129 = sor.u32 %s127, %s128
      %p130 = scmp.eq.s32.totalorder %s129, 0
      %s132 = sadd.s32 %s131, 1
      %s133 = scalar_select %p130, %s131, %s132
      %p136 = pneg %p130
      %p137 = scmp.eq.s32.totalorder %s23, 3
      %p138 = por %p136, %p137
      %p139 = scmp.ne.s32.totalorder %s131, %s134
      %p140 = scmp.eq.s32.totalorder %s23, 0
      %p141 = por %p139, %p140
      %p142 = scmp.ne.s32.totalorder %s131, %s134
      %p143 = scmp.eq.s32.totalorder %s28, 3
      %p144 = por %p142, %p143
      %p145 = scmp.ne.s32.totalorder %s134, %s135
      %p146 = scmp.eq.s32.totalorder %s28, 0
      %p147 = por %p145, %p146
      %p148 = scmp.ne.s32.totalorder %s134, %s135
      %p149 = scmp.eq.s32.totalorder %s29, 3
      %p150 = por %p148, %p149
      %p152 = scmp.ne.s32.totalorder %s135, %s151
      %p153 = scmp.eq.s32.totalorder %s29, 0
      %p154 = por %p152, %p153
      %p155 = scmp.le.s32.totalorder 1, %s23
      %p156 = scmp.lt.s32.totalorder %s23, 5
      %p157 = pnand %p155, %p156
      %p158 = pneg %p157
      // Predicated region
      $region9: #{tpu_custom_call.1} parent=5 // pred_check
        _
      $region10: #{tpu_custom_call.1} parent=5 // pred_check_branch
        %160 = sbr.rel (%p157) target = $region12
      $region11: #{tpu_custom_call.1} parent=5 // pred_region
        %s161 = ssub.s32 %s23, 1
      $region12: #{tpu_custom_call.1} parent=5 // pred_fallthru
        _
      %p162 = scmp.lt.s32.totalorder %s23, 4
      // Predicated region
      $region13: #{tpu_custom_call.1} parent=5 // pred_check
        %p163 = pneg %p162
      $region14: #{tpu_custom_call.1} parent=5 // pred_check_branch
        %165 = sbr.rel (%p163) target = $region16
      $region15: #{tpu_custom_call.1} parent=5 // pred_region
        // Predicated region
        $region17: #{tpu_custom_call.1} parent=15 // pred_check
          %p166 = pneg %p57
        $region18: #{tpu_custom_call.1} parent=15 // pred_check_branch
          %168 = sbr.rel (%p166) target = $region20
        $region19: #{tpu_custom_call.1} parent=15 // pred_region
          %s169 = sand.u32 %s47, 1
          %s170 = scalar_lea.sflag [#allocation5], %s169
          %s171 = sand.u32 %s47, 1
          %s172 = smul.addr %s171, 8
          %s173 = scalar_lea.vmem [#allocation4], %s172
          %s175 = ssub.s32 128, 128
          %176 = vsyncadd %s170, %s175
          %s177 = smul.addr %s30, 2
          %s178 = sadd.s32 %s31, %s177
          %s179 = smul.addr %s178, 128
          %s180 = scalar_lea.hbm %s1, %s179
          %s182 = sshll.u32 %s173, 4
          %s183 = int_to_ptr.vmem [resolvable:$true] %s182
          %185 = dma.hbm_to_vmem [thread:$0]  %s180, 128, %s183, %s170
        $region20: #{tpu_custom_call.1} parent=15 // pred_fallthru
          _
        // Predicated region
        $region21: #{tpu_custom_call.1} parent=15 // pred_check
          %p186 = pneg %p85
        $region22: #{tpu_custom_call.1} parent=15 // pred_check_branch
          %188 = sbr.rel (%p186) target = $region24
        $region23: #{tpu_custom_call.1} parent=15 // pred_region
          %s189 = sand.u32 %s23, 1
          %s190 = scalar_lea.sflag [#allocation8], %s189
          %s191 = sand.u32 %s75, 1
          %s192 = smul.addr %s191, 32
          %s193 = scalar_lea.vmem [#allocation7], %s192
          %s195 = ssub.s32 512, 512
          %196 = vsyncadd %s190, %s195
          %s197 = smul.addr %s30, 8
          %s198 = sadd.s32 %s31, %s197
          %s199 = smul.addr %s198, 128
          %s200 = scalar_lea.hbm %s2, %s199
          %s201 = sshll.u32 %s193, 4
          %s202 = int_to_ptr.vmem [resolvable:$true] %s201
          %207 = dma.hbm_to_vmem [thread:$0]  %s200, 512, %s202, %s190, 256, 128, 8
        $region24: #{tpu_custom_call.1} parent=15 // pred_fallthru
          _
        // Predicated region
        $region25: #{tpu_custom_call.1} parent=15 // pred_check
          %p208 = pneg %p113
        $region26: #{tpu_custom_call.1} parent=15 // pred_check_branch
          %210 = sbr.rel (%p208) target = $region28
        $region27: #{tpu_custom_call.1} parent=15 // pred_region
          %s211 = sand.u32 %s23, 1
          %s212 = scalar_lea.sflag [#allocation8], %s211
          %s213 = sand.u32 %s103, 1
          %s214 = smul.addr %s213, 8
          %s215 = scalar_lea.vmem [#allocation9], %s214
          %s217 = ssub.s32 128, 128
          %218 = vsyncadd %s212, %s217
          %s219 = smul.addr %s30, 2
          %s220 = sadd.s32 %s31, %s219
          %s221 = smul.addr %s220, 128
          %s222 = scalar_lea.hbm %s3, %s221
          %s224 = sshll.u32 %s215, 4
          %s225 = int_to_ptr.vmem [resolvable:$true] %s224
          %227 = dma.hbm_to_vmem [thread:$0]  %s222, 128, %s225, %s212
        $region28: #{tpu_custom_call.1} parent=15 // pred_fallthru
          _
      $region16: #{tpu_custom_call.1} parent=5 // pred_fallthru
        _
      %p228 = scmp.le.s32.totalorder 1, %s23
      %p229 = scmp.lt.s32.totalorder %s23, 5
      %p230 = pnand %p228, %p229
      %p231 = pneg %p230
      // Predicated region
      $region29: #{tpu_custom_call.1} parent=5 // pred_check
        _
      $region30: #{tpu_custom_call.1} parent=5 // pred_check_branch
        %233 = sbr.rel (%p230) target = $region32
      $region31: #{tpu_custom_call.1} parent=5 // pred_region
        %s234 = ssub.s32 %s23, 1
        %s235 = sand.u32 %s50, 1
        %s236 = scalar_lea.sflag [#allocation5], %s235
        %s237 = sand.u32 %s50, 1
        %s238 = smul.addr %s237, 8
        %s239 = scalar_lea.vmem [#allocation4], %s238
        // Predicated region
        $region33: #{tpu_custom_call.1} parent=31 // pred_check
          %p240 = pneg %p63
        $region34: #{tpu_custom_call.1} parent=31 // pred_check_branch
          %242 = sbr.rel (%p240) target = $region36
        $region35: #{tpu_custom_call.1} parent=31 // pred_region
          %243 = dma.done %s236, 128
        $region36: #{tpu_custom_call.1} parent=31 // pred_fallthru
          _
        %s244 = sand.u32 %s28, 1
        %s245 = scalar_lea.sflag [#allocation8], %s244
        %s246 = sand.u32 %s78, 1
        %s247 = smul.addr %s246, 32
        %s248 = scalar_lea.vmem [#allocation7], %s247
        // Predicated region
        $region37: #{tpu_custom_call.1} parent=31 // pred_check
          %p249 = pneg %p91
        $region38: #{tpu_custom_call.1} parent=31 // pred_check_branch
          %251 = sbr.rel (%p249) target = $region40
        $region39: #{tpu_custom_call.1} parent=31 // pred_region
          %252 = dma.done %s245, 512
        $region40: #{tpu_custom_call.1} parent=31 // pred_fallthru
          _
        %s253 = sand.u32 %s28, 1
        %s254 = scalar_lea.sflag [#allocation8], %s253
        %s255 = sand.u32 %s106, 1
        %s256 = smul.addr %s255, 8
        %s257 = scalar_lea.vmem [#allocation9], %s256
        // Predicated region
        $region41: #{tpu_custom_call.1} parent=31 // pred_check
          %p258 = pneg %p119
        $region42: #{tpu_custom_call.1} parent=31 // pred_check_branch
          %260 = sbr.rel (%p258) target = $region44
        $region43: #{tpu_custom_call.1} parent=31 // pred_region
          %261 = dma.done %s254, 128
        $region44: #{tpu_custom_call.1} parent=31 // pred_fallthru
          _
        %s262 = sand.u32 %s50, 1
        %s263 = scalar_lea.sflag [#allocation5], %s262
        %s264 = sand.u32 %s50, 1
        %s265 = smul.addr %s264, 8
        %s266 = scalar_lea.vmem [#allocation4], %s265
        %p267 = pneg %p63
        %p268 = pneg %p60
        %s269 = sand.u32 %s28, 1
        %s270 = scalar_lea.sflag [#allocation8], %s269
        %s271 = sand.u32 %s78, 1
        %s272 = smul.addr %s271, 32
        %s273 = scalar_lea.vmem [#allocation7], %s272
        %p274 = pneg %p91
        %p275 = pneg %p88
        %s276 = sand.u32 %s28, 1
        %s277 = scalar_lea.sflag [#allocation8], %s276
        %s278 = sand.u32 %s106, 1
        %s279 = smul.addr %s278, 8
        %s280 = scalar_lea.vmem [#allocation9], %s279
        %p281 = pneg %p119
        %p282 = pneg %p116
        %p283 = pneg %p147
        %p284 = pneg %p144
        %s285 = sand.u32 %s134, 1
        %s286 = scalar_lea.sflag [#allocation6], %s285
        %s287 = sand.u32 %s134, 1
        %s288 = smul.addr %s287, 8
        %s289 = scalar_lea.vmem [#allocation10], %s288
        %s290 = sld [smem:[#allocation3 + %s32]]
        %v291 = vrcp.pop 4.0
        %s292 = vtos %v291
        %s293 = smul.f32 %s290, %s292
        %v294 = vstv %s293
        %v295 = vrcp.pop %v294
        %s296 = vtos %v295
        %v297 = vld [vmem:[%s239] sm:$0xff]
        %v298 = vlaneseq
        %v299 = vshrl.u32 %v298, 7
        %vm300 = vcmp.lt.s32.totalorder %v299, 4
        %v301 = vsel %vm300, -1.0, 1.0
        %v302 = vrot.slane %v297, 4
        %v303 = vsub.f32 0.0, %v301
        %v304 = vmul.f32 %v302, %v303
        %v305 = vld [vmem:[%s248] sm:$0xff]
        %v306 = vld [vmem:[%s257] sm:$0x1]
        %v307 = vstv %s296
        %v308 = vmul.f32 %v306, %v307
        %v309 = vld [vmem:[%s257 + $0x4] sm:$0x1]
        %v310 = vmul.f32 %v309, %v307
        %v311 = vmul.f32 %v305, %v305
        %v312 = vrot.slane %v311, 4
        %v313 = vadd.f32 %v311, %v312
        %v314 = vrot.slane %v313, 2
        %v315 = vadd.f32 %v313, %v314
        %v316 = vrot.slane %v315, 1
        %v317 = vadd.f32 %v315, %v316
        %v318 = vmul.f32 %v305, %v297
        %v319 = vrot.slane %v318, 4
        %v320 = vadd.f32 %v318, %v319
        %v321 = vrot.slane %v320, 2
        %v322 = vadd.f32 %v320, %v321
        %v323 = vrot.slane %v322, 1
        %v324 = vadd.f32 %v322, %v323
        %v325 = vmul.f32 %v305, %v304
        %v326 = vrot.slane %v325, 4
        %v327 = vadd.f32 %v325, %v326
        %v328 = vrot.slane %v327, 2
        %v329 = vadd.f32 %v327, %v328
        %v330 = vrot.slane %v329, 1
        %v331 = vadd.f32 %v329, %v330
        %v332 = vstv %s293
        %v333 = vadd.f32 %v317, %v332
        %v334 = vrcp.pop %v333
        %v335 = vmul.f32 1.0, %v334
        %v336 = vmul.f32 %v308, %v317
        %v337 = vadd.f32 %v336, %v324
        %v338 = vmul.f32 %v337, %v335
        %v339 = vmul.f32 %v310, %v317
        %v340 = vadd.f32 %v339, %v331
        %v341 = vmul.f32 %v340, %v335
        %v342 = vsub.f32 %v308, %v338
        %v343 = vsub.f32 %v310, %v341
        %v344 = vlaneseq
        %v345 = vshrl.u32 %v344, 7
        %v346 = vsub.s32 0, %v345
        %v347 = vrot.slane %v342, %v346
        %v348 = vmul.f32 %v305, %v347
        %v349 = vadd.f32 %v348, 0.0
        %v350 = vlaneseq
        %v351 = vshrl.u32 %v350, 7
        %v352 = vsub.s32 0, %v351
        %v353 = vrot.slane %v343, %v352
        %v354 = vmul.f32 %v305, %v353
        %v355 = vadd.f32 %v354, 0.0
        %s356 = scalar_lea.vmem %s248, 8 [#allocation7]
        %v357 = vld [vmem:[%s356] sm:$0xff]
        %v358 = vld [vmem:[%s257 + $0x1] sm:$0x1]
        %v359 = vmul.f32 %v358, %v307
        %v360 = vld [vmem:[%s257 + $0x5] sm:$0x1]
        %v361 = vmul.f32 %v360, %v307
        %v362 = vmul.f32 %v357, %v357
        %v363 = vrot.slane %v362, 4
        %v364 = vadd.f32 %v362, %v363
        %v365 = vrot.slane %v364, 2
        %v366 = vadd.f32 %v364, %v365
        %v367 = vrot.slane %v366, 1
        %v368 = vadd.f32 %v366, %v367
        %v369 = vmul.f32 %v357, %v297
        %v370 = vrot.slane %v369, 4
        %v371 = vadd.f32 %v369, %v370
        %v372 = vrot.slane %v371, 2
        %v373 = vadd.f32 %v371, %v372
        %v374 = vrot.slane %v373, 1
        %v375 = vadd.f32 %v373, %v374
        %v376 = vmul.f32 %v357, %v304
        %v377 = vrot.slane %v376, 4
        %v378 = vadd.f32 %v376, %v377
        %v379 = vrot.slane %v378, 2
        %v380 = vadd.f32 %v378, %v379
        %v381 = vrot.slane %v380, 1
        %v382 = vadd.f32 %v380, %v381
        %v383 = vadd.f32 %v368, %v332
        %v384 = vrcp.pop %v383
        %v385 = vmul.f32 1.0, %v384
        %v386 = vmul.f32 %v359, %v368
        %v387 = vadd.f32 %v386, %v375
        %v388 = vmul.f32 %v387, %v385
        %v389 = vmul.f32 %v361, %v368
        %v390 = vadd.f32 %v389, %v382
        %v391 = vmul.f32 %v390, %v385
        %v392 = vsub.f32 %v359, %v388
        %v393 = vsub.f32 %v361, %v391
        %v394 = vlaneseq
        %v395 = vshrl.u32 %v394, 7
        %v396 = vsub.s32 0, %v395
        %v397 = vrot.slane %v392, %v396
        %v398 = vmul.f32 %v357, %v397
        %v399 = vadd.f32 %v349, %v398
        %v400 = vlaneseq
        %v401 = vshrl.u32 %v400, 7
        %v402 = vsub.s32 0, %v401
        %v403 = vrot.slane %v393, %v402
        %v404 = vmul.f32 %v357, %v403
        %v405 = vadd.f32 %v355, %v404
        %s406 = scalar_lea.vmem %s248, 16 [#allocation7]
        %v407 = vld [vmem:[%s406] sm:$0xff]
        %v408 = vld [vmem:[%s257 + $0x2] sm:$0x1]
        %v409 = vmul.f32 %v408, %v307
        %v410 = vld [vmem:[%s257 + $0x6] sm:$0x1]
        %v411 = vmul.f32 %v410, %v307
        %v412 = vmul.f32 %v407, %v407
        %v413 = vrot.slane %v412, 4
        %v414 = vadd.f32 %v412, %v413
        %v415 = vrot.slane %v414, 2
        %v416 = vadd.f32 %v414, %v415
        %v417 = vrot.slane %v416, 1
        %v418 = vadd.f32 %v416, %v417
        %v419 = vmul.f32 %v407, %v297
        %v420 = vrot.slane %v419, 4
        %v421 = vadd.f32 %v419, %v420
        %v422 = vrot.slane %v421, 2
        %v423 = vadd.f32 %v421, %v422
        %v424 = vrot.slane %v423, 1
        %v425 = vadd.f32 %v423, %v424
        %v426 = vmul.f32 %v407, %v304
        %v427 = vrot.slane %v426, 4
        %v428 = vadd.f32 %v426, %v427
        %v429 = vrot.slane %v428, 2
        %v430 = vadd.f32 %v428, %v429
        %v431 = vrot.slane %v430, 1
        %v432 = vadd.f32 %v430, %v431
        %v433 = vadd.f32 %v418, %v332
        %v434 = vrcp.pop %v433
        %v435 = vmul.f32 1.0, %v434
        %v436 = vmul.f32 %v409, %v418
        %v437 = vadd.f32 %v436, %v425
        %v438 = vmul.f32 %v437, %v435
        %v439 = vmul.f32 %v411, %v418
        %v440 = vadd.f32 %v439, %v432
        %v441 = vmul.f32 %v440, %v435
        %v442 = vsub.f32 %v409, %v438
        %v443 = vsub.f32 %v411, %v441
        %v444 = vlaneseq
        %v445 = vshrl.u32 %v444, 7
        %v446 = vsub.s32 0, %v445
        %v447 = vrot.slane %v442, %v446
        %v448 = vmul.f32 %v407, %v447
        %v449 = vadd.f32 %v399, %v448
        %v450 = vlaneseq
        %v451 = vshrl.u32 %v450, 7
        %v452 = vsub.s32 0, %v451
        %v453 = vrot.slane %v443, %v452
        %v454 = vmul.f32 %v407, %v453
        %v455 = vadd.f32 %v405, %v454
        %s456 = scalar_lea.vmem %s248, 24 [#allocation7]
        %v457 = vld [vmem:[%s456] sm:$0xff]
        %v458 = vld [vmem:[%s257 + $0x3] sm:$0x1]
        %v459 = vmul.f32 %v458, %v307
        %v460 = vld [vmem:[%s257 + $0x7] sm:$0x1]
        %v461 = vmul.f32 %v460, %v307
        %v462 = vmul.f32 %v457, %v457
        %v463 = vrot.slane %v462, 4
        %v464 = vadd.f32 %v462, %v463
        %v465 = vrot.slane %v464, 2
        %v466 = vadd.f32 %v464, %v465
        %v467 = vrot.slane %v466, 1
        %v468 = vadd.f32 %v466, %v467
        %v469 = vmul.f32 %v457, %v297
        %v470 = vrot.slane %v469, 4
        %v471 = vadd.f32 %v469, %v470
        %v472 = vrot.slane %v471, 2
        %v473 = vadd.f32 %v471, %v472
        %v474 = vrot.slane %v473, 1
        %v475 = vadd.f32 %v473, %v474
        %v476 = vmul.f32 %v457, %v304
        %v477 = vrot.slane %v476, 4
        %v478 = vadd.f32 %v476, %v477
        %v479 = vrot.slane %v478, 2
        %v480 = vadd.f32 %v478, %v479
        %v481 = vrot.slane %v480, 1
        %v482 = vadd.f32 %v480, %v481
        %v483 = vadd.f32 %v468, %v332
        %v484 = vrcp.pop %v483
        %v485 = vmul.f32 1.0, %v484
        %v486 = vmul.f32 %v459, %v468
        %v487 = vadd.f32 %v486, %v475
        %v488 = vmul.f32 %v487, %v485
        %v489 = vmul.f32 %v461, %v468
        %v490 = vadd.f32 %v489, %v482
        %v491 = vmul.f32 %v490, %v485
        %v492 = vsub.f32 %v459, %v488
        %v493 = vsub.f32 %v461, %v491
        %v494 = vlaneseq
        %v495 = vshrl.u32 %v494, 7
        %v496 = vsub.s32 0, %v495
        %v497 = vrot.slane %v492, %v496
        %v498 = vmul.f32 %v457, %v497
        %v499 = vadd.f32 %v449, %v498
        %v500 = vlaneseq
        %v501 = vshrl.u32 %v500, 7
        %v502 = vsub.s32 0, %v501
        %v503 = vrot.slane %v493, %v502
        %v504 = vmul.f32 %v457, %v503
        %v505 = vadd.f32 %v455, %v504
        %v506 = vrot.slane %v505, 4
        %v507 = vmul.f32 %v506, %v301
        %v508 = vadd.f32 %v499, %v507
        %v509 = vmul.f32 %v508, 0.25
        %v510 = vadd.f32 %v297, %v509
        %511 = vst [vmem:[%s289] sm:$0xff] %v510
        %s512 = sand.u32 %s134, 1
        %s513 = scalar_lea.sflag [#allocation6], %s512
        %s514 = sand.u32 %s134, 1
        %s515 = smul.addr %s514, 8
        %s516 = scalar_lea.vmem [#allocation10], %s515
        // Predicated region
        $region45: #{tpu_custom_call.1} parent=31 // pred_check
          %p517 = pneg %p144
        $region46: #{tpu_custom_call.1} parent=31 // pred_check_branch
          %519 = sbr.rel (%p517) target = $region48
        $region47: #{tpu_custom_call.1} parent=31 // pred_region
          %s521 = ssub.s32 128, 128
          %522 = vsyncadd %s513, %s521
          %s523 = smul.addr %s32, 2
          %s524 = sadd.s32 %s33, %s523
          %s525 = smul.addr %s524, 128
          %s526 = scalar_lea.hbm %s4, %s525
          %s528 = sshll.u32 %s516, 4
          %s529 = int_to_ptr.vmem [resolvable:$true] %s528
          %531 = dma.vmem_to_hbm [thread:$0]  %s529, 128, %s526, %s513
        $region48: #{tpu_custom_call.1} parent=31 // pred_fallthru
          _
      $region32: #{tpu_custom_call.1} parent=5 // pred_fallthru
        _
      %p532 = scmp.le.s32.totalorder 2, %s23
      // Predicated region
      $region49: #{tpu_custom_call.1} parent=5 // pred_check
        %p533 = pneg %p532
      $region50: #{tpu_custom_call.1} parent=5 // pred_check_branch
        %535 = sbr.rel (%p533) target = $region52
      $region51: #{tpu_custom_call.1} parent=5 // pred_region
        %s536 = ssub.s32 %s23, 2
        // Predicated region
        $region53: #{tpu_custom_call.1} parent=51 // pred_check
          %p537 = pneg %p150
        $region54: #{tpu_custom_call.1} parent=51 // pred_check_branch
          %539 = sbr.rel (%p537) target = $region56
        $region55: #{tpu_custom_call.1} parent=51 // pred_region
          %s540 = sand.u32 %s135, 1
          %s541 = scalar_lea.sflag [#allocation6], %s540
          %s542 = sand.u32 %s135, 1
          %s543 = smul.addr %s542, 8
          %s544 = scalar_lea.vmem [#allocation10], %s543
          %545 = dma.done %s541, 128
        $region56: #{tpu_custom_call.1} parent=51 // pred_fallthru
          _
      $region52: #{tpu_custom_call.1} parent=5 // pred_fallthru
        _
    $region6: #{tpu_custom_call.1} parent=1 // loop_footer
      %s27 = sadd.s32 1, %s23
    $region7: #{tpu_custom_call.1} parent=1 // loop_footer_branch
      %22 = sbr.rel target = $region3
    $region8: #{tpu_custom_call.1} parent=1 // loop_exit
      _
    %546 = vsyncpa [#allocation5], 1
    %s547 = scalar_lea.sflag [#allocation5], 1
    %548 = vsyncpa %s547, 1
    %549 = vsyncpa [#allocation8], 1
    %s550 = scalar_lea.sflag [#allocation8], 1
    %551 = vsyncpa %s550, 1
    %552 = vsyncpa [#allocation6], 1
    %s553 = scalar_lea.sflag [#allocation6], 1
    %554 = vsyncpa %s553, 1

</llo_original>
